<compile_context>
chip_gen: v5e
topology: v5e:2x2
jax: 0.10.0
libtpu: 0.0.40
codegen_flags: <defaults>
</compile_context>

<pallas_src>
import jax
import jax.numpy as jnp
from jax import lax
from jax.experimental import pallas as pl
from jax.experimental.pallas import tpu as pltpu


def metalearner_kernel(user_ref, task_ref, v_ref, emb_ref, c_ref, out_ref):
    # user_ref: (B, 1)  int32 VMEM   user indices
    # task_ref: (B, D)  f32   VMEM   task features
    # v_ref   : (1, D)  f32   VMEM   fully-folded task vector (task_w -> fc1 -> fc2)
    # emb_ref : (1, U)  f32   VMEM   fully-folded per-user scalar logits
    # c_ref   : (1,)    f32   SMEM   folded constant ((task_b@W1t.T+fc1_b)@w2 + b2)
    # out_ref : (B, 1)  f32   VMEM
    B = task_ref.shape[0]
    U = emb_ref.shape[1]

    # --- User lookup: clamp (matches JAX gather semantics for OOB indices; the
    # PyTorch reference would error on OOB), then one-hot compare + lane reduce.
    uid = jnp.clip(user_ref[...], 0, U - 1)                        # (B, 1)
    lane_ids = lax.broadcasted_iota(jnp.int32, (B, U), 1)          # (B, U)
    onehot = lane_ids == uid                                       # (B, U)
    u_logit = jnp.sum(jnp.where(onehot, emb_ref[...], 0.0),
                      axis=-1, keepdims=True)                      # (B, 1)

    # --- Task path: matrix-vector -> VPU multiply + XLU lane reduce (no MXU).
    t_logit = jnp.sum(task_ref[...] * v_ref[...],
                      axis=-1, keepdims=True)                      # (B, 1)

    # NOTE: when B scales, tile with grid=(pl.cdiv(B, TB),), TB a multiple of 8,
    # dimension_semantics=("parallel",) (two TCs on v7x) and make the output
    # lane-dense ((1, TB) per block). At B=8 that would be pure overhead.
    out_ref[...] = jnp.tanh(u_logit + t_logit + c_ref[0]).astype(out_ref.dtype)


def prepare_params(params):
    """One-time full fold (hoisted out of the per-call path)."""
    dim = params["task_w"].shape[0]
    w1 = params["fc1_w"]                      # (dim, 2*dim), torch layout
    w1u = w1[:, :dim]                         # user half of fc1
    w1t = w1[:, dim:]                         # task half of fc1
    w2 = params["fc2_w"].reshape(-1)          # (dim,)
    b2 = params["fc2_b"].reshape(())          # scalar

    emb_logits = (params["emb_table"] @ w1u.T) @ w2                 # (num_users+1,)
    v_task = (params["task_w"].T @ w1t.T) @ w2                      # (dim,)
    c = (params["task_b"] @ w1t.T + params["fc1_b"]) @ w2 + b2      # scalar

    return {
        "emb_logits": emb_logits.reshape(1, -1).astype(jnp.float32),  # (1, U) lane-dense
        "v_task": v_task.reshape(1, -1).astype(jnp.float32),          # (1, dim)
        "c": jnp.asarray(c, jnp.float32).reshape(1,),                 # (1,) SMEM scalar
    }


def metalearner_forward(user_idx, task, prepared):
    """user_idx: (B,) int, task: (B, dim) f32. Returns (B, 1) f32."""
    B, _ = task.shape
    return pl.pallas_call(
        metalearner_kernel,
        out_shape=jax.ShapeDtypeStruct((B, 1), jnp.float32),
        in_specs=[
            pl.BlockSpec(memory_space=pltpu.MemorySpace.VMEM),   # user indices
            pl.BlockSpec(memory_space=pltpu.MemorySpace.VMEM),   # task features
            pl.BlockSpec(memory_space=pltpu.MemorySpace.VMEM),   # v_task vector
            pl.BlockSpec(memory_space=pltpu.MemorySpace.VMEM),   # per-user logits
            pl.BlockSpec(memory_space=pltpu.MemorySpace.SMEM),   # folded constant c
        ],
        out_specs=pl.BlockSpec(memory_space=pltpu.MemorySpace.VMEM),
    )(
        user_idx.astype(jnp.int32).reshape(B, 1),
        task,
        prepared["v_task"],
        prepared["emb_logits"],
        prepared["c"],
    )


def reference_forward(user_idx, task, params):
    """Pure-JAX reference mirroring the PyTorch module exactly."""
    user_emb = params["emb_table"][user_idx]                    # (B, dim)
    task_emb = task @ params["task_w"].T + params["task_b"]     # (B, dim)
    feat = jnp.concatenate([user_emb, task_emb], axis=-1)       # (B, 2*dim)
    h = feat @ params["fc1_w"].T + params["fc1_b"]              # (B, dim)
    return jnp.tanh(h @ params["fc2_w"].T + params["fc2_b"])    # (B, 1)


def init_params(key, dim, num_users):
    ks = jax.random.split(key, 7)
    scale = 0.1
    return {
        "emb_table": scale * jax.random.normal(ks[0], (num_users + 1, dim), jnp.float32),
        "task_w":    scale * jax.random.normal(ks[1], (dim, dim), jnp.float32),
        "task_b":    scale * jax.random.normal(ks[2], (dim,), jnp.float32),
        "fc1_w":     scale * jax.random.normal(ks[3], (dim, 2 * dim), jnp.float32),
        "fc1_b":     scale * jax.random.normal(ks[4], (dim,), jnp.float32),
        "fc2_w":     scale * jax.random.normal(ks[5], (1, dim), jnp.float32),
        "fc2_b":     scale * jax.random.normal(ks[6], (1,), jnp.float32),
    }


if __name__ == "__main__":
    # Small, forward-consistent shapes: bert_max_len (dim) = 32, num_users = 16, batch = 8.
    B, DIM, NUM_USERS = 8, 32, 16

    key = jax.random.PRNGKey(0)
    k_param, k_user, k_task = jax.random.split(key, 3)

    params = init_params(k_param, DIM, NUM_USERS)
    user = jax.random.randint(k_user, (B,), 0, NUM_USERS + 1, dtype=jnp.int32)
    task = jax.random.normal(k_task, (B, DIM), jnp.float32)

    prepared = prepare_params(params)        # one-time full fold (not per-call)

    out = metalearner_forward(user, task, prepared)
    out = jax.block_until_ready(out)

    ref = reference_forward(user, task, params)
    assert out.shape == (B, 1), out.shape
    # Fold re-associates f32 sums; tolerance reflects that (tiny values at dim=32).
    assert jnp.allclose(out, ref, atol=1e-5, rtol=1e-4), (out, ref)
    print("KERNEL_OK")
</pallas_src>

<mosaic_0001>
module attributes {stable_mosaic.version = 11 : i64} {
  func.func @metalearner_kernel(%arg0: memref<8x1xi32, #tpu.memory_space<vmem>>, %arg1: memref<8x32xf32, #tpu.memory_space<vmem>>, %arg2: memref<1x32xf32, #tpu.memory_space<vmem>>, %arg3: memref<1x17xf32, #tpu.memory_space<vmem>>, %arg4: memref<1xf32, #tpu.memory_space<smem>>, %arg5: memref<8x1xf32, #tpu.memory_space<vmem>>) attributes {dimension_semantics = [], scalar_prefetch = 0 : i64, scratch_operands = 0 : i64, tpu.core_type = #tpu.core_type<tc>} {
    %c0 = arith.constant 0 : index
    %c0_0 = arith.constant 0 : index
    %0 = vector.load %arg0[%c0, %c0_0] : memref<8x1xi32, #tpu.memory_space<vmem>>, vector<8x1xi32>
    %c0_i32 = arith.constant 0 : i32
    %c16_i32 = arith.constant 16 : i32
    %1 = vector.broadcast %c0_i32 : i32 to vector<8x1xi32>
    %2 = arith.maxsi %1, %0 : vector<8x1xi32>
    %3 = vector.broadcast %c16_i32 : i32 to vector<8x1xi32>
    %4 = arith.minsi %3, %2 : vector<8x1xi32>
    %5 = tpu.iota {dimensions = array<i32: 1>} : vector<8x17xi32>
    %6 = vector.broadcast %4 : vector<8x1xi32> to vector<8x17xi32>
    %7 = arith.cmpi eq, %5, %6 : vector<8x17xi32>
    %c0_1 = arith.constant 0 : index
    %c0_2 = arith.constant 0 : index
    %8 = vector.load %arg3[%c0_1, %c0_2] : memref<1x17xf32, #tpu.memory_space<vmem>>, vector<1x17xf32>
    %cst = arith.constant 0.000000e+00 : f32
    %9 = vector.shape_cast %8 : vector<1x17xf32> to vector<1x17xf32>
    %10 = vector.broadcast %9 : vector<1x17xf32> to vector<8x17xf32>
    %11 = vector.broadcast %cst : f32 to vector<8x17xf32>
    %12 = arith.select %7, %10, %11 : vector<8x17xi1>, vector<8x17xf32>
    %cst_3 = arith.constant dense<0.000000e+00> : vector<8xf32>
    %13 = vector.multi_reduction <add>, %12, %cst_3 [1] : vector<8x17xf32> to vector<8xf32>
    %14 = vector.shape_cast %13 : vector<8xf32> to vector<8x1xf32>
    %c0_4 = arith.constant 0 : index
    %c0_5 = arith.constant 0 : index
    %15 = vector.load %arg1[%c0_4, %c0_5] : memref<8x32xf32, #tpu.memory_space<vmem>>, vector<8x32xf32>
    %c0_6 = arith.constant 0 : index
    %c0_7 = arith.constant 0 : index
    %16 = vector.load %arg2[%c0_6, %c0_7] : memref<1x32xf32, #tpu.memory_space<vmem>>, vector<1x32xf32>
    %17 = vector.broadcast %16 : vector<1x32xf32> to vector<8x32xf32>
    %18 = arith.mulf %15, %17 : vector<8x32xf32>
    %cst_8 = arith.constant dense<0.000000e+00> : vector<8xf32>
    %19 = vector.multi_reduction <add>, %18, %cst_8 [1] : vector<8x32xf32> to vector<8xf32>
    %20 = vector.shape_cast %19 : vector<8xf32> to vector<8x1xf32>
    %21 = arith.addf %14, %20 : vector<8x1xf32>
    %c0_9 = arith.constant 0 : index
    %22 = memref.load %arg4[%c0_9] : memref<1xf32, #tpu.memory_space<smem>>
    %23 = vector.broadcast %22 : f32 to vector<8x1xf32>
    %24 = arith.addf %21, %23 : vector<8x1xf32>
    %25 = math.tanh %24 : vector<8x1xf32>
    %c0_10 = arith.constant 0 : index
    %c0_11 = arith.constant 0 : index
    %26 = vector.load %arg5[%c0_10, %c0_11] : memref<8x1xf32, #tpu.memory_space<vmem>>, vector<8x1xf32>
    tpu.vector_store %arg5[%c0_10, %c0_11], %25 {strides = array<i32>} : memref<8x1xf32, #tpu.memory_space<vmem>>, vector<8x1xf32>,
    return
  }
}

</mosaic_0001>

<llo_original>
// kernel: tpu_custom_call.1
$region0: #{tpu_custom_call.1}
  #allocation0 [shape = 'u32[]', space=smem, size = 0x4, offset = 0x4, fixed_abs, tag = 'smem constant byte address 0x4 - core index']
  #allocation1 [shape = 'u32[72,128]{1,0:T(1,128)}', space=vmem, size = 0x9000, scoped, tag = 'internal scratch']
  #allocation2 [shape = 'f32[1]{0:T(128)S(6)}', space=smem, size = 0x200, scoped, tag = 'scoped memory for tpu_custom_call.1']
  %s0 = inlined_call_operand.vmem [shape: s32[8,1], index: 0, kind: input, shape index: {}]
  %s1 = inlined_call_operand.vmem [shape: f32[8,32], index: 1, kind: input, shape index: {}]
  %s2 = inlined_call_operand.vmem [shape: f32[1,32], index: 2, kind: input, shape index: {}]
  %s3 = inlined_call_operand.vmem [shape: f32[1,17], index: 3, kind: input, shape index: {}]
  %s4 = inlined_call_operand.<no memory space> [shape: f32[1], index: 4, kind: input, shape index: {}]
  %s5 = inlined_call_operand.vmem [shape: f32[8,1], index: 5, kind: output, shape index: {}]
  %s6 = sld [smem:[#allocation0]]
  $region30: #{tpu_custom_call.1} parent=0
    _
  %s8 = ssub.s32 1, %s6
  %s9 = scalar_select 0, %s8, %s6
  %10 = sst [smem:[#allocation2]] %s4
  // Predicated region
  $region2: #{tpu_custom_call.1} parent=0 // pred_check
    _
  $region3: #{tpu_custom_call.1} parent=0 // pred_check_branch
    %12 = sbr.rel (0) target = $region5
  $region4: #{tpu_custom_call.1} parent=0 // pred_region
    _
  $region5: #{tpu_custom_call.1} parent=0 // pred_fallthru
    _
  // Predicated region
  $region6: #{tpu_custom_call.1} parent=0 // pred_check
    _
  $region7: #{tpu_custom_call.1} parent=0 // pred_check_branch
    %14 = sbr.rel (0) target = $region9
  $region8: #{tpu_custom_call.1} parent=0 // pred_region
    _
  $region9: #{tpu_custom_call.1} parent=0 // pred_fallthru
    _
  // Predicated region
  $region10: #{tpu_custom_call.1} parent=0 // pred_check
    _
  $region11: #{tpu_custom_call.1} parent=0 // pred_check_branch
    %16 = sbr.rel (0) target = $region13
  $region12: #{tpu_custom_call.1} parent=0 // pred_region
    _
  $region13: #{tpu_custom_call.1} parent=0 // pred_fallthru
    _
  // Predicated region
  $region14: #{tpu_custom_call.1} parent=0 // pred_check
    _
  $region15: #{tpu_custom_call.1} parent=0 // pred_check_branch
    %18 = sbr.rel (0) target = $region17
  $region16: #{tpu_custom_call.1} parent=0 // pred_region
    _
  $region17: #{tpu_custom_call.1} parent=0 // pred_fallthru
    _
  // Predicated region
  $region18: #{tpu_custom_call.1} parent=0 // pred_check
    _
  $region19: #{tpu_custom_call.1} parent=0 // pred_check_branch
    %20 = sbr.rel (0) target = $region21
  $region20: #{tpu_custom_call.1} parent=0 // pred_region
    _
  $region21: #{tpu_custom_call.1} parent=0 // pred_fallthru
    _
  %v21 = vld [vmem:[%s0] sm:$0xff]
  %vm22 = vcmp.gt.s32.totalorder %v21, 0
  %v23 = vsel %vm22, %v21, 0
  %vm24 = vcmp.lt.s32.totalorder %v23, 16
  %v25 = vsel %vm24, %v23, 16
  %v26 = vlaneseq
  %v27 = vand.u32 %v26, 127
  %28 = vset.pattern.permute.xlu0 0
  %29 = vperm.xlu0 %28, %v25
  %v30 = vpop.permute.xlu0 %29
  %vm31 = vcmp.eq.s32.totalorder %v27, %v30
  %v32 = vld [vmem:[%s3] sm:$0x1]
  %v34 = vperm.slane %v32, 0
  %v36 = vsel %vm31, %v34, 0.0
  %vm37 = vcmask 138240
  %v38 = vsel %vm37, %v36, 0.0
  %39 = vadd.xlane.f32.xlu0 %v38
  %v40 = vpop.xlane.xlu0 %39
  %v41 = vld [vmem:[%s1] sm:$0xff]
  %v42 = vld [vmem:[%s2] sm:$0x1]
  %v44 = vperm.slane %v42, 0
  %v46 = vmul.f32 %v41, %v44
  %vm47 = vcmask 261120
  %v48 = vsel %vm47, %v46, 0.0
  %49 = vadd.xlane.f32.xlu0 %v48
  %v50 = vpop.xlane.xlu0 %49
  %v51 = vadd.f32 %v40, %v50
  %s52 = sld [smem:[#allocation2]]
  %v53 = vstv %s52
  %v54 = vadd.f32 %v51, %v53
  %v55 = vtanh.pop %v54
  %vm56 = vcmask 7168
  %57 = vst.msk [vmem:[%s5] sm:$0xff] %vm56, %v55
  // Predicated region
  $region22: #{tpu_custom_call.1} parent=0 // pred_check
    _
  $region23: #{tpu_custom_call.1} parent=0 // pred_check_branch
    %59 = sbr.rel (0) target = $region25
  $region24: #{tpu_custom_call.1} parent=0 // pred_region
    _
  $region25: #{tpu_custom_call.1} parent=0 // pred_fallthru
    _
  // Predicated region
  $region26: #{tpu_custom_call.1} parent=0 // pred_check
    _
  $region27: #{tpu_custom_call.1} parent=0 // pred_check_branch
    %61 = sbr.rel (0) target = $region29
  $region28: #{tpu_custom_call.1} parent=0 // pred_region
    _
  $region29: #{tpu_custom_call.1} parent=0 // pred_fallthru
    _

</llo_original>
